<compile_context>
chip_gen: v6e
topology: v6e:2x2x1
jax: 0.10.0
libtpu: 0.0.40
codegen_flags: <defaults>
</compile_context>

<pallas_src>
import functools

import jax
import jax.numpy as jnp
from jax.experimental import pallas as pl
from jax.experimental.pallas import tpu as pltpu

_BN_EPS = 1e-5
_SQRT_HALF = 0.7071067811865476
_OUT_DIM = 9
_LANE = 128
_NEG_BIG = -1e30  # finite "minus infinity" -> no inf/nan risk in the online softmax


def _cdiv(a, b):
    return -(-a // b)


def _round_up(v, m):
    return _cdiv(v, m) * m


def _erf(x):
    # Abramowitz & Stegun 7.1.26 polynomial, |err| < 1.5e-7 -> matches PyTorch's
    # exact-erf nn.GELU() well within f32 / atol=1e-5.
    a1, a2, a3, a4, a5 = 0.254829592, -0.284496736, 1.421413741, -1.453152027, 1.061405429
    p = 0.3275911
    s = jnp.where(x >= 0.0, 1.0, -1.0)
    z = jnp.abs(x)
    t = 1.0 / (1.0 + p * z)
    poly = ((((a5 * t + a4) * t + a3) * t + a2) * t + a1) * t
    return s * (1.0 - poly * jnp.exp(-z * z))


def _gelu_exact(x):
    return 0.5 * x * (1.0 + _erf(x * _SQRT_HALF))


def _stacked_kernel(x_ref, wp_ref, w1_ref, b1_ref, w2_ref, b2_ref, out_ref,
                    m_sc, l_sc, acc_sc, *,
                    pool_attention: bool, seq_valid: int, ts: int, mask_seq: bool):
    si = pl.program_id(1)

    @pl.when(si == 0)
    def _init():
        if pool_attention:
            m_sc[...] = jnp.full_like(m_sc, _NEG_BIG)
            l_sc[...] = jnp.zeros_like(l_sc)
        acc_sc[...] = jnp.zeros_like(acc_sc)

    x = x_ref[...].astype(jnp.float32)                       # [TB, TS, F]

    if pool_attention:
        wp = wp_ref[...].astype(jnp.float32)                 # [1, F] Linear(F->1, no bias)
        logits = jnp.sum(x * wp, axis=-1)                    # [TB, TS]
        if mask_seq:
            pos = si * ts + jax.lax.broadcasted_iota(jnp.int32, logits.shape, 1)
            logits = jnp.where(pos < seq_valid, logits, _NEG_BIG)
        # Online softmax accumulation across seq chunks (flash-style).
        m_prev = m_sc[...]                                   # [TB, 1]
        m_new = jnp.maximum(m_prev, jnp.max(logits, axis=-1, keepdims=True))
        alpha = jnp.exp(m_prev - m_new)                      # EUP
        p = jnp.exp(logits - m_new)                          # EUP
        l_sc[...] = alpha * l_sc[...] + jnp.sum(p, axis=-1, keepdims=True)
        # TODO(synk): if a bundle dump ever shows VALU/XLU binding (not HBM), map
        # this to a batched MXU dot_general; at HBM-bound block sizes it is free.
        acc_sc[...] = alpha * acc_sc[...] + jnp.sum(p[:, :, None] * x, axis=1)
        m_sc[...] = m_new
    else:
        acc_sc[...] = acc_sc[...] + jnp.sum(x, axis=1)       # running sum for mean

    @pl.when(si == pl.num_programs(1) - 1)
    def _finalize():
        if pool_attention:
            pooled = acc_sc[...] / l_sc[...]                 # exact divide, once/block
        else:
            pooled = acc_sc[...] * (1.0 / seq_valid)
        # high_encoder: Linear(+folded BN) -> GELU -> Linear(+folded BN) -> Sigmoid
        h = jnp.dot(pooled, w1_ref[...], preferred_element_type=jnp.float32) + b1_ref[...]
        h = _gelu_exact(h)
        y = jnp.dot(h, w2_ref[...], preferred_element_type=jnp.float32) + b2_ref[...]
        # sigmoid(y) == 0.5 * (1 + tanh(0.5*y)) -> tanh runs on the EUP slot.
        out_ref[...] = (0.5 * (1.0 + jnp.tanh(0.5 * y))).astype(out_ref.dtype)


def _fold_bn(w, b, gamma, beta, mean, var):
    """Fold eval-mode BatchNorm1d into the preceding Linear (wrapper-side)."""
    scale = gamma * jax.lax.rsqrt(var + _BN_EPS)             # (1, N)
    return w * scale, (b - mean) * scale + beta


def _physical_vmem_bytes():
    try:
        return int(pltpu.get_tpu_info().vmem_capacity_bytes)
    except Exception:
        return 64 * 2**20        # conservative (v7x-sized) fallback


def _plan_tiles(B, S, F, itemsize, Ep, out_cols, target, force_ts=None):
    """Pick (TB, TS) batch/seq tile sizes and return (tb, ts, footprint_bytes)."""
    tb_unit = 8
    ts_unit = 8 * max(1, 4 // itemsize)          # f32 -> 8, bf16 -> 16, 8-bit -> 32

    w_bytes = (F + F * Ep + Ep + Ep * out_cols + out_cols) * 4
    reserve = (1 << 20) + 2 * w_bytes            # double-buffered weights + internal scratch

    def footprint(tb, ts):
        x_blk = tb * ts * F * itemsize           # one x input buffer
        f32_tmp = 2 * tb * ts * F * 4            # f32 upcast copy + one elementwise temp
        out_blk = tb * out_cols * 4
        scratch = tb * 3 * _LANE * 4             # m / l / acc scratch, lane-padded
        return 2 * x_blk + f32_tmp + 2 * out_blk + scratch + reserve

    if force_ts is not None:                     # test hook: force S-tiling
        ts = S if force_ts >= S else max(ts_unit, (force_ts // ts_unit) * ts_unit)
        tb = B if B <= tb_unit else tb_unit
        return tb, ts, footprint(tb, ts)

    tb_floor = B if B < tb_unit else tb_unit
    if footprint(tb_floor, S) <= target:
        ts = S
        if B <= tb_unit:
            tb = B
        else:
            b_pad = _round_up(B, tb_unit)
            per_b_row = 2 * S * F * itemsize + 2 * S * F * 4 + 2 * out_cols * 4 + 3 * _LANE * 4
            tb_fit = max(tb_unit,
                         min(b_pad, ((target - reserve) // per_b_row) // tb_unit * tb_unit))
            # Guarantee >=2 (ideally up to 8) grid steps so both v7x TCs engage
            # and the double buffer has something to overlap.
            desired = min(8, max(2, b_pad // tb_unit))
            tb_cap = _round_up(_cdiv(B, desired), tb_unit)
            tb = max(tb_unit, min(tb_fit, tb_cap))
        return tb, ts, footprint(tb, ts)

    # Long sequences: S-tiling with online-softmax / running-sum accumulation.
    tb = tb_floor
    per_s_row = tb * F * (2 * itemsize + 2 * 4)
    const_s = 2 * tb * out_cols * 4 + tb * 3 * _LANE * 4 + reserve
    ts_fit = (target - const_s) // max(1, per_s_row)
    ts = max(ts_unit, min(S, (ts_fit // ts_unit) * ts_unit))
    return tb, ts, footprint(tb, ts)


def stacked_forward(inputs, params, *, pool="attention", x_stream_dtype=None,
                    force_ts=None):
    """inputs: [B, S, F] float32.  Returns {'high': [B, 9] float32}."""
    B, S, F = inputs.shape
    E = params["w1"].shape[1]
    pool_attention = (pool == "attention")

    # --- wrapper-side folding / packing -------------------------------------
    w1f, b1f = _fold_bn(params["w1"], params["b1"], params["g1"], params["be1"],
                        params["rm1"], params["rv1"])
    w2f, b2f = _fold_bn(params["w2"], params["b2"], params["g2"], params["be2"],
                        params["rm2"], params["rv2"])

    # Pad E to a lane-dense multiple of 128 (K=128 for the 2nd matmul; GELU on
    # full lanes). Padded lanes are exactly zero -> contribute nothing.
    Ep = max(_LANE, _round_up(E, _LANE))
    w1p = jnp.zeros((F, Ep), jnp.float32).at[:, :E].set(w1f)
    b1p = jnp.zeros((1, Ep), jnp.float32).at[:, :E].set(b1f)

    # Output width: lane-dense 128 pad when the x read dominates traffic,
    # 9-wide full-extent block (legal, masked vst) when S*F is small.
    out_cols = _LANE if S * F >= 2048 else _OUT_DIM
    w2p = jnp.zeros((Ep, out_cols), jnp.float32).at[:E, :_OUT_DIM].set(w2f)
    b2p = jnp.zeros((1, out_cols), jnp.float32).at[:, :_OUT_DIM].set(b2f)

    wp = params.get("w_pool")
    if wp is None:
        wp = jnp.zeros((1, F), jnp.float32)

    # --- optional bf16 (or fp8) streaming of the dominant x HBM read --------
    x = inputs if x_stream_dtype is None else inputs.astype(x_stream_dtype)
    itemsize = jnp.dtype(x.dtype).itemsize

    # --- generation-aware tiling ---------------------------------------------
    cap = _physical_vmem_bytes()
    target = int(cap * 3) // 4                       # ~48 MiB on v7x, ~96 MiB on v5e/v6e
    TB, TS, fp = _plan_tiles(B, S, F, itemsize, Ep, out_cols, target, force_ts=force_ts)

    num_b = _cdiv(B, TB)
    num_s = _cdiv(S, TS)
    Bp, Sp = num_b * TB, num_s * TS
    if (Bp, Sp) != (B, S):
        x = jnp.pad(x, ((0, Bp - B), (0, Sp - S), (0, 0)))
    mask_seq = pool_attention and (Sp != S)
    grid = (num_b, num_s)

    # Exact footprint, never claiming more than ~90% of physical VMEM.
    vmem_limit = int(min(cap * 9 // 10, max(16 << 20, fp)))

    kernel = functools.partial(_stacked_kernel, pool_attention=pool_attention,
                               seq_valid=S, ts=TS, mask_seq=mask_seq)

    out = pl.pallas_call(
        kernel,
        out_shape=jax.ShapeDtypeStruct((Bp, out_cols), jnp.float32),
        grid_spec=pltpu.PrefetchScalarGridSpec(
            num_scalar_prefetch=0,
            grid=grid,
            in_specs=[
                pl.BlockSpec((TB, TS, F), lambda i, s: (i, s, 0)),   # x streamed over (B, S)
                pl.BlockSpec((1, F), lambda i, s: (0, 0)),           # w_pool
                pl.BlockSpec((F, Ep), lambda i, s: (0, 0)),          # w1 (BN folded, E-padded)
                pl.BlockSpec((1, Ep), lambda i, s: (0, 0)),          # b1
                pl.BlockSpec((Ep, out_cols), lambda i, s: (0, 0)),   # w2 (BN folded, padded)
                pl.BlockSpec((1, out_cols), lambda i, s: (0, 0)),    # b2
            ],
            out_specs=pl.BlockSpec((TB, out_cols), lambda i, s: (i, 0)),
            scratch_shapes=[
                pltpu.VMEM((TB, 1), jnp.float32),   # running max
                pltpu.VMEM((TB, 1), jnp.float32),   # running exp-sum
                pltpu.VMEM((TB, F), jnp.float32),   # running weighted sum / sum
            ],
        ),
        compiler_params=pltpu.CompilerParams(
            dimension_semantics=("parallel", "arbitrary"),
            vmem_limit_bytes=vmem_limit),
    )(x, wp, w1p, b1p, w2p, b2p)
    return {"high": out[:B, :_OUT_DIM]}


def _reference(x, p, pool):
    # Pure-JAX reference of the PyTorch forward (eval-mode BN).
    if pool == "attention":
        logits = jnp.sum(x * p["w_pool"], axis=-1, keepdims=True)
        attn = jax.nn.softmax(logits, axis=1)
        pooled = jnp.sum(attn * x, axis=1)
    else:
        pooled = jnp.mean(x, axis=1)
    h = pooled @ p["w1"] + p["b1"]
    h = (h - p["rm1"]) / jnp.sqrt(p["rv1"] + _BN_EPS) * p["g1"] + p["be1"]
    h = jax.nn.gelu(h, approximate=False)
    y = h @ p["w2"] + p["b2"]
    y = (y - p["rm2"]) / jnp.sqrt(p["rv2"] + _BN_EPS) * p["g2"] + p["be2"]
    return jax.nn.sigmoid(y)


def _make_params(key, F, E):
    ks = jax.random.split(key, 16)
    return {
        "w_pool": 0.1 * jax.random.normal(ks[1], (1, F), jnp.float32),            # Linear(F,1,bias=False)
        "w1": jax.random.normal(ks[2], (F, E), jnp.float32) / jnp.sqrt(F),        # Linear(F,E)
        "b1": 0.1 * jax.random.normal(ks[3], (1, E), jnp.float32),
        "g1": 1.0 + 0.1 * jax.random.normal(ks[4], (1, E), jnp.float32),          # BN(E) gamma
        "be1": 0.1 * jax.random.normal(ks[5], (1, E), jnp.float32),               # BN(E) beta
        "rm1": 0.1 * jax.random.normal(ks[6], (1, E), jnp.float32),               # BN(E) running_mean
        "rv1": jax.random.uniform(ks[7], (1, E), jnp.float32, minval=0.5, maxval=1.5),
        "w2": jax.random.normal(ks[8], (E, _OUT_DIM), jnp.float32) / jnp.sqrt(E), # Linear(E,9)
        "b2": 0.1 * jax.random.normal(ks[9], (1, _OUT_DIM), jnp.float32),
        "g2": 1.0 + 0.1 * jax.random.normal(ks[10], (1, _OUT_DIM), jnp.float32),  # BN(9) gamma
        "be2": 0.1 * jax.random.normal(ks[11], (1, _OUT_DIM), jnp.float32),       # BN(9) beta
        "rm2": 0.1 * jax.random.normal(ks[12], (1, _OUT_DIM), jnp.float32),       # BN(9) running_mean
        "rv2": jax.random.uniform(ks[13], (1, _OUT_DIM), jnp.float32, minval=0.5, maxval=1.5),
    }


if __name__ == "__main__":
    key = jax.random.PRNGKey(0)
    k_x1, k_p1, k_x3, k_p3, k_x4, k_p4 = jax.random.split(key, 6)

    # --- Test 1: attention pool, small shapes (single grid step) ------------
    B, S, F, E = 2, 8, 32, 32
    x1 = jax.random.normal(k_x1, (B, S, F), jnp.float32)
    p1 = _make_params(k_p1, F, E)
    out1 = jax.block_until_ready(stacked_forward(x1, p1, pool="attention")["high"])
    ref1 = _reference(x1, p1, "attention")
    assert out1.shape == (B, _OUT_DIM)
    assert jnp.allclose(out1, ref1, atol=1e-5, rtol=1e-5), "attention-pool mismatch"

    # --- Test 2: mean pool ----------------------------------------------------
    out2 = jax.block_until_ready(stacked_forward(x1, p1, pool="mean")["high"])
    ref2 = _reference(x1, p1, "mean")
    assert jnp.allclose(out2, ref2, atol=1e-5, rtol=1e-5), "mean-pool mismatch"

    # --- Test 3: forced S-tiling (online softmax, 3 seq chunks + seq masking) -
    B3, S3 = 4, 20
    x3 = jax.random.normal(k_x3, (B3, S3, F), jnp.float32)
    p3 = _make_params(k_p3, F, E)
    out3 = jax.block_until_ready(
        stacked_forward(x3, p3, pool="attention", force_ts=8)["high"])
    ref3 = _reference(x3, p3, "attention")
    assert out3.shape == (B3, _OUT_DIM)
    assert jnp.allclose(out3, ref3, atol=1e-5, rtol=1e-5), "S-tiled online-softmax mismatch"

    # --- Test 4: bf16 streaming of x (math stays f32 in-kernel) --------------
    B4 = 16
    x4 = jax.random.normal(k_x4, (B4, S, F), jnp.float32)
    p4 = _make_params(k_p4, F, E)
    out4 = jax.block_until_ready(
        stacked_forward(x4, p4, pool="attention", x_stream_dtype=jnp.bfloat16)["high"])
    ref4 = _reference(x4, p4, "attention")
    assert out4.shape == (B4, _OUT_DIM)
    assert jnp.allclose(out4, ref4, atol=2e-2, rtol=2e-2), "bf16-streamed mismatch"

    print("KERNEL_OK")
</pallas_src>

<mosaic_0001>
module attributes {stable_mosaic.version = 11 : i64} {
  func.func @_stacked_kernel(%arg0: i32, %arg1: i32, %arg2: memref<2x8x32xf32, #tpu.memory_space<vmem>>, %arg3: memref<1x32xf32, #tpu.memory_space<vmem>>, %arg4: memref<32x128xf32, #tpu.memory_space<vmem>>, %arg5: memref<1x128xf32, #tpu.memory_space<vmem>>, %arg6: memref<128x9xf32, #tpu.memory_space<vmem>>, %arg7: memref<1x9xf32, #tpu.memory_space<vmem>>, %arg8: memref<2x9xf32, #tpu.memory_space<vmem>>, %arg9: memref<2x1xf32, #tpu.memory_space<vmem>>, %arg10: memref<2x1xf32, #tpu.memory_space<vmem>>, %arg11: memref<2x32xf32, #tpu.memory_space<vmem>>) attributes {dimension_semantics = [#tpu.dimension_semantics<parallel>, #tpu.dimension_semantics<arbitrary>], iteration_bounds = array<i64: 1, 1>, scalar_prefetch = 0 : i64, scratch_operands = 3 : i64, tpu.core_type = #tpu.core_type<tc>, window_params = [{transform_indices = @transform_0, window_bounds = array<i64: 2, 8, 32>}, {pipeline_mode = #tpu.pipeline_mode<synchronous>, transform_indices = @transform_1, window_bounds = array<i64: 1, 32>}, {pipeline_mode = #tpu.pipeline_mode<synchronous>, transform_indices = @transform_2, window_bounds = array<i64: 32, 128>}, {pipeline_mode = #tpu.pipeline_mode<synchronous>, transform_indices = @transform_3, window_bounds = array<i64: 1, 128>}, {pipeline_mode = #tpu.pipeline_mode<synchronous>, transform_indices = @transform_4, window_bounds = array<i64: 128, 9>}, {pipeline_mode = #tpu.pipeline_mode<synchronous>, transform_indices = @transform_5, window_bounds = array<i64: 1, 9>}, {transform_indices = @transform_6, window_bounds = array<i64: 2, 9>}]} {
    %c0_i32 = arith.constant 0 : i32
    %0 = arith.cmpi eq, %arg1, %c0_i32 : i32
    %1 = arith.extui %0 : i1 to i32
    %c0_i32_0 = arith.constant 0 : i32
    %2 = arith.cmpi ne, %1, %c0_i32_0 : i32
    scf.if %2 {
      %cst_22 = arith.constant -1.000000e+30 : f32
      %37 = vector.broadcast %cst_22 : f32 to vector<2x1xf32>
      %c0_23 = arith.constant 0 : index
      %c0_24 = arith.constant 0 : index
      %38 = vector.load %arg9[%c0_23, %c0_24] : memref<2x1xf32, #tpu.memory_space<vmem>>, vector<2x1xf32>
      tpu.vector_store %arg9[%c0_23, %c0_24], %37 {strides = array<i32>} : memref<2x1xf32, #tpu.memory_space<vmem>>, vector<2x1xf32>,
      %cst_25 = arith.constant 0.000000e+00 : f32
      %39 = vector.broadcast %cst_25 : f32 to vector<2x1xf32>
      %c0_26 = arith.constant 0 : index
      %c0_27 = arith.constant 0 : index
      %40 = vector.load %arg10[%c0_26, %c0_27] : memref<2x1xf32, #tpu.memory_space<vmem>>, vector<2x1xf32>
      tpu.vector_store %arg10[%c0_26, %c0_27], %39 {strides = array<i32>} : memref<2x1xf32, #tpu.memory_space<vmem>>, vector<2x1xf32>,
      %cst_28 = arith.constant 0.000000e+00 : f32
      %41 = vector.broadcast %cst_28 : f32 to vector<2x32xf32>
      %c0_29 = arith.constant 0 : index
      %c0_30 = arith.constant 0 : index
      %42 = vector.load %arg11[%c0_29, %c0_30] : memref<2x32xf32, #tpu.memory_space<vmem>>, vector<2x32xf32>
      tpu.vector_store %arg11[%c0_29, %c0_30], %41 {strides = array<i32>} : memref<2x32xf32, #tpu.memory_space<vmem>>, vector<2x32xf32>,
    } else {
    }
    %c0 = arith.constant 0 : index
    %c0_1 = arith.constant 0 : index
    %c0_2 = arith.constant 0 : index
    %3 = vector.load %arg2[%c0, %c0_1, %c0_2] : memref<2x8x32xf32, #tpu.memory_space<vmem>>, vector<2x8x32xf32>
    %c0_3 = arith.constant 0 : index
    %c0_4 = arith.constant 0 : index
    %4 = vector.load %arg3[%c0_3, %c0_4] : memref<1x32xf32, #tpu.memory_space<vmem>>, vector<1x32xf32>
    %5 = vector.shape_cast %4 : vector<1x32xf32> to vector<1x1x32xf32>
    %6 = vector.broadcast %5 : vector<1x1x32xf32> to vector<2x8x32xf32>
    %7 = arith.mulf %3, %6 : vector<2x8x32xf32>
    %cst = arith.constant dense<0.000000e+00> : vector<2x8xf32>
    %8 = vector.multi_reduction <add>, %7, %cst [2] : vector<2x8x32xf32> to vector<2x8xf32>
    %c0_5 = arith.constant 0 : index
    %c0_6 = arith.constant 0 : index
    %9 = vector.load %arg9[%c0_5, %c0_6] : memref<2x1xf32, #tpu.memory_space<vmem>>, vector<2x1xf32>
    %cst_7 = arith.constant dense<0xFF800000> : vector<2xf32>
    %10 = vector.multi_reduction <maximumf>, %8, %cst_7 [1] : vector<2x8xf32> to vector<2xf32>
    %11 = vector.shape_cast %10 : vector<2xf32> to vector<2x1xf32>
    %12 = arith.maximumf %9, %11 : vector<2x1xf32>
    %13 = arith.subf %9, %12 : vector<2x1xf32>
    %14 = math.exp %13 : vector<2x1xf32>
    %15 = vector.broadcast %12 : vector<2x1xf32> to vector<2x8xf32>
    %16 = arith.subf %8, %15 : vector<2x8xf32>
    %17 = math.exp %16 : vector<2x8xf32>
    %c0_8 = arith.constant 0 : index
    %c0_9 = arith.constant 0 : index
    %18 = vector.load %arg10[%c0_8, %c0_9] : memref<2x1xf32, #tpu.memory_space<vmem>>, vector<2x1xf32>
    %19 = arith.mulf %14, %18 : vector<2x1xf32>
    %cst_10 = arith.constant dense<0.000000e+00> : vector<2xf32>
    %20 = vector.multi_reduction <add>, %17, %cst_10 [1] : vector<2x8xf32> to vector<2xf32>
    %21 = vector.shape_cast %20 : vector<2xf32> to vector<2x1xf32>
    %22 = arith.addf %19, %21 : vector<2x1xf32>
    %c0_11 = arith.constant 0 : index
    %c0_12 = arith.constant 0 : index
    %23 = vector.load %arg10[%c0_11, %c0_12] : memref<2x1xf32, #tpu.memory_space<vmem>>, vector<2x1xf32>
    tpu.vector_store %arg10[%c0_11, %c0_12], %22 {strides = array<i32>} : memref<2x1xf32, #tpu.memory_space<vmem>>, vector<2x1xf32>,
    %c0_13 = arith.constant 0 : index
    %c0_14 = arith.constant 0 : index
    %24 = vector.load %arg11[%c0_13, %c0_14] : memref<2x32xf32, #tpu.memory_space<vmem>>, vector<2x32xf32>
    %25 = vector.broadcast %14 : vector<2x1xf32> to vector<2x32xf32>
    %26 = arith.mulf %25, %24 : vector<2x32xf32>
    %27 = vector.shape_cast %17 : vector<2x8xf32> to vector<2x8x1xf32>
    %28 = vector.broadcast %27 : vector<2x8x1xf32> to vector<2x8x32xf32>
    %29 = arith.mulf %28, %3 : vector<2x8x32xf32>
    %cst_15 = arith.constant dense<0.000000e+00> : vector<2x32xf32>
    %30 = vector.multi_reduction <add>, %29, %cst_15 [1] : vector<2x8x32xf32> to vector<2x32xf32>
    %31 = arith.addf %26, %30 : vector<2x32xf32>
    %c0_16 = arith.constant 0 : index
    %c0_17 = arith.constant 0 : index
    %32 = vector.load %arg11[%c0_16, %c0_17] : memref<2x32xf32, #tpu.memory_space<vmem>>, vector<2x32xf32>
    tpu.vector_store %arg11[%c0_16, %c0_17], %31 {strides = array<i32>} : memref<2x32xf32, #tpu.memory_space<vmem>>, vector<2x32xf32>,
    %c0_18 = arith.constant 0 : index
    %c0_19 = arith.constant 0 : index
    %33 = vector.load %arg9[%c0_18, %c0_19] : memref<2x1xf32, #tpu.memory_space<vmem>>, vector<2x1xf32>
    tpu.vector_store %arg9[%c0_18, %c0_19], %12 {strides = array<i32>} : memref<2x1xf32, #tpu.memory_space<vmem>>, vector<2x1xf32>,
    %c0_i32_20 = arith.constant 0 : i32
    %34 = arith.cmpi eq, %arg1, %c0_i32_20 : i32
    %35 = arith.extui %34 : i1 to i32
    %c0_i32_21 = arith.constant 0 : i32
    %36 = arith.cmpi ne, %35, %c0_i32_21 : i32
    scf.if %36 {
      %c0_22 = arith.constant 0 : index
      %c0_23 = arith.constant 0 : index
      %37 = vector.load %arg11[%c0_22, %c0_23] : memref<2x32xf32, #tpu.memory_space<vmem>>, vector<2x32xf32>
      %c0_24 = arith.constant 0 : index
      %c0_25 = arith.constant 0 : index
      %38 = vector.load %arg10[%c0_24, %c0_25] : memref<2x1xf32, #tpu.memory_space<vmem>>, vector<2x1xf32>
      %39 = vector.broadcast %38 : vector<2x1xf32> to vector<2x32xf32>
      %40 = arith.divf %37, %39 : vector<2x32xf32>
      %c0_26 = arith.constant 0 : index
      %c0_27 = arith.constant 0 : index
      %41 = vector.load %arg4[%c0_26, %c0_27] : memref<32x128xf32, #tpu.memory_space<vmem>>, vector<32x128xf32>
      %cst_28 = arith.constant dense<0.000000e+00> : vector<2x128xf32>
      %42 = tpu.matmul %40, %41, %cst_28 {dimension_numbers = #tpu.dot_dimension_numbers<[1], [0], [0], [1], [0, 0, 1, 1], [], []>} : vector<2x32xf32>, vector<32x128xf32>, vector<2x128xf32> -> vector<2x128xf32>
      %c0_29 = arith.constant 0 : index
      %c0_30 = arith.constant 0 : index
      %43 = vector.load %arg5[%c0_29, %c0_30] : memref<1x128xf32, #tpu.memory_space<vmem>>, vector<1x128xf32>
      %44 = vector.broadcast %43 : vector<1x128xf32> to vector<2x128xf32>
      %45 = arith.addf %42, %44 : vector<2x128xf32>
      %cst_31 = arith.constant 5.000000e-01 : f32
      %46 = vector.broadcast %cst_31 : f32 to vector<2x128xf32>
      %47 = arith.mulf %46, %45 : vector<2x128xf32>
      %cst_32 = arith.constant 0.707106769 : f32
      %48 = vector.broadcast %cst_32 : f32 to vector<2x128xf32>
      %49 = arith.mulf %45, %48 : vector<2x128xf32>
      %cst_33 = arith.constant 0.000000e+00 : f32
      %50 = vector.broadcast %cst_33 : f32 to vector<2x128xf32>
      %51 = arith.cmpf oge, %49, %50 : vector<2x128xf32>
      %cst_34 = arith.constant 1.000000e+00 : f32
      %cst_35 = arith.constant -1.000000e+00 : f32
      %52 = vector.broadcast %cst_34 : f32 to vector<2x128xf32>
      %53 = vector.broadcast %cst_35 : f32 to vector<2x128xf32>
      %54 = arith.select %51, %52, %53 : vector<2x128xi1>, vector<2x128xf32>
      %55 = math.absf %49 : vector<2x128xf32>
      %cst_36 = arith.constant 0.327591091 : f32
      %56 = vector.broadcast %cst_36 : f32 to vector<2x128xf32>
      %57 = arith.mulf %56, %55 : vector<2x128xf32>
      %cst_37 = arith.constant 1.000000e+00 : f32
      %58 = vector.broadcast %cst_37 : f32 to vector<2x128xf32>
      %59 = arith.addf %58, %57 : vector<2x128xf32>
      %cst_38 = arith.constant 1.000000e+00 : f32
      %60 = vector.broadcast %cst_38 : f32 to vector<2x128xf32>
      %61 = arith.divf %60, %59 : vector<2x128xf32>
      %cst_39 = arith.constant 1.06140542 : f32
      %62 = vector.broadcast %cst_39 : f32 to vector<2x128xf32>
      %63 = arith.mulf %62, %61 : vector<2x128xf32>
      %cst_40 = arith.constant -1.45315206 : f32
      %64 = vector.broadcast %cst_40 : f32 to vector<2x128xf32>
      %65 = arith.addf %63, %64 : vector<2x128xf32>
      %66 = arith.mulf %65, %61 : vector<2x128xf32>
      %cst_41 = arith.constant 1.42141378 : f32
      %67 = vector.broadcast %cst_41 : f32 to vector<2x128xf32>
      %68 = arith.addf %66, %67 : vector<2x128xf32>
      %69 = arith.mulf %68, %61 : vector<2x128xf32>
      %cst_42 = arith.constant -0.284496725 : f32
      %70 = vector.broadcast %cst_42 : f32 to vector<2x128xf32>
      %71 = arith.addf %69, %70 : vector<2x128xf32>
      %72 = arith.mulf %71, %61 : vector<2x128xf32>
      %cst_43 = arith.constant 0.254829586 : f32
      %73 = vector.broadcast %cst_43 : f32 to vector<2x128xf32>
      %74 = arith.addf %72, %73 : vector<2x128xf32>
      %75 = arith.mulf %74, %61 : vector<2x128xf32>
      %cst_44 = arith.constant 0.000000e+00 : f32
      %76 = vector.broadcast %cst_44 : f32 to vector<2x128xf32>
      %77 = arith.subf %76, %55 : vector<2x128xf32>
      %78 = arith.mulf %77, %55 : vector<2x128xf32>
      %79 = math.exp %78 : vector<2x128xf32>
      %80 = arith.mulf %75, %79 : vector<2x128xf32>
      %cst_45 = arith.constant 1.000000e+00 : f32
      %81 = vector.broadcast %cst_45 : f32 to vector<2x128xf32>
      %82 = arith.subf %81, %80 : vector<2x128xf32>
      %83 = arith.mulf %54, %82 : vector<2x128xf32>
      %cst_46 = arith.constant 1.000000e+00 : f32
      %84 = vector.broadcast %cst_46 : f32 to vector<2x128xf32>
      %85 = arith.addf %84, %83 : vector<2x128xf32>
      %86 = arith.mulf %47, %85 : vector<2x128xf32>
      %c0_47 = arith.constant 0 : index
      %c0_48 = arith.constant 0 : index
      %87 = vector.load %arg6[%c0_47, %c0_48] : memref<128x9xf32, #tpu.memory_space<vmem>>, vector<128x9xf32>
      %cst_49 = arith.constant dense<0.000000e+00> : vector<2x9xf32>
      %88 = tpu.matmul %86, %87, %cst_49 {dimension_numbers = #tpu.dot_dimension_numbers<[1], [0], [0], [1], [0, 0, 1, 1], [], []>} : vector<2x128xf32>, vector<128x9xf32>, vector<2x9xf32> -> vector<2x9xf32>
      %c0_50 = arith.constant 0 : index
      %c0_51 = arith.constant 0 : index
      %89 = vector.load %arg7[%c0_50, %c0_51] : memref<1x9xf32, #tpu.memory_space<vmem>>, vector<1x9xf32>
      %90 = vector.broadcast %89 : vector<1x9xf32> to vector<2x9xf32>
      %91 = arith.addf %88, %90 : vector<2x9xf32>
      %cst_52 = arith.constant 5.000000e-01 : f32
      %92 = vector.broadcast %cst_52 : f32 to vector<2x9xf32>
      %93 = arith.mulf %92, %91 : vector<2x9xf32>
      %94 = math.tanh %93 : vector<2x9xf32>
      %cst_53 = arith.constant 1.000000e+00 : f32
      %95 = vector.broadcast %cst_53 : f32 to vector<2x9xf32>
      %96 = arith.addf %95, %94 : vector<2x9xf32>
      %cst_54 = arith.constant 5.000000e-01 : f32
      %97 = vector.broadcast %cst_54 : f32 to vector<2x9xf32>
      %98 = arith.mulf %97, %96 : vector<2x9xf32>
      %c0_55 = arith.constant 0 : index
      %c0_56 = arith.constant 0 : index
      %99 = vector.load %arg8[%c0_55, %c0_56] : memref<2x9xf32, #tpu.memory_space<vmem>>, vector<2x9xf32>
      tpu.vector_store %arg8[%c0_55, %c0_56], %98 {strides = array<i32>} : memref<2x9xf32, #tpu.memory_space<vmem>>, vector<2x9xf32>,
    } else {
    }
    return
  }
  func.func @transform_0(%arg0: i32, %arg1: i32) -> (i32, i32, i32) {
    %c0_i32 = arith.constant 0 : i32
    %c0_i32_0 = arith.constant 0 : i32
    return %arg0, %arg1, %c0_i32 : i32, i32, i32
  }
  func.func @transform_1(%arg0: i32, %arg1: i32) -> (i32, i32) {
    %c0_i32 = arith.constant 0 : i32
    %c0_i32_0 = arith.constant 0 : i32
    %c0_i32_1 = arith.constant 0 : i32
    return %c0_i32, %c0_i32_0 : i32, i32
  }
  func.func @transform_2(%arg0: i32, %arg1: i32) -> (i32, i32) {
    %c0_i32 = arith.constant 0 : i32
    %c0_i32_0 = arith.constant 0 : i32
    %c0_i32_1 = arith.constant 0 : i32
    return %c0_i32, %c0_i32_0 : i32, i32
  }
  func.func @transform_3(%arg0: i32, %arg1: i32) -> (i32, i32) {
    %c0_i32 = arith.constant 0 : i32
    %c0_i32_0 = arith.constant 0 : i32
    %c0_i32_1 = arith.constant 0 : i32
    return %c0_i32, %c0_i32_0 : i32, i32
  }
  func.func @transform_4(%arg0: i32, %arg1: i32) -> (i32, i32) {
    %c0_i32 = arith.constant 0 : i32
    %c0_i32_0 = arith.constant 0 : i32
    %c0_i32_1 = arith.constant 0 : i32
    return %c0_i32, %c0_i32_0 : i32, i32
  }
  func.func @transform_5(%arg0: i32, %arg1: i32) -> (i32, i32) {
    %c0_i32 = arith.constant 0 : i32
    %c0_i32_0 = arith.constant 0 : i32
    %c0_i32_1 = arith.constant 0 : i32
    return %c0_i32, %c0_i32_0 : i32, i32
  }
  func.func @transform_6(%arg0: i32, %arg1: i32) -> (i32, i32) {
    %c0_i32 = arith.constant 0 : i32
    %c0_i32_0 = arith.constant 0 : i32
    return %arg0, %c0_i32 : i32, i32
  }
}

</mosaic_0001>

<llo_original>
// kernel: tpu_custom_call.1
$region0: #{tpu_custom_call.1}
  #allocation0 [shape = 'u32[]', space=smem, size = 0x4, offset = 0x4, fixed_abs, tag = 'smem constant byte address 0x4 - core index']
  #allocation1 [shape = 'u32[144,128]{1,0:T(1,128)}', space=vmem, size = 0x12000, scoped, tag = 'internal scratch']
  #allocation2 [shape = 'f32[2,1]{1,0:T(2,128)}', space=vmem, size = 0x400, scoped, tag = 'scratch operand']
  #allocation3 [shape = 'f32[2,1]{1,0:T(2,128)}', space=vmem, size = 0x400, scoped, tag = 'scratch operand']
  #allocation4 [shape = 'f32[2,32]{1,0:T(2,128)}', space=vmem, size = 0x400, scoped, tag = 'scratch operand']
  %s0 = inlined_call_operand.vmem [shape: f32[2,8,32], index: 0, kind: input, shape index: {}]
  %s1 = inlined_call_operand.vmem [shape: f32[1,32], index: 1, kind: input, shape index: {}]
  %s2 = inlined_call_operand.vmem [shape: f32[32,128], index: 2, kind: input, shape index: {}]
  %s3 = inlined_call_operand.vmem [shape: f32[1,128], index: 3, kind: input, shape index: {}]
  %s4 = inlined_call_operand.vmem [shape: f32[128,9], index: 4, kind: input, shape index: {}]
  %s5 = inlined_call_operand.vmem [shape: f32[1,9], index: 5, kind: input, shape index: {}]
  %s6 = inlined_call_operand.hbm [shape: f32[2,9], index: 6, kind: output, shape index: {}]
  %s7 = sld [smem:[#allocation0]]
  $region42: #{tpu_custom_call.1} parent=0
    _
  %s9 = ssub.s32 1, %s7
  %s10 = scalar_select 0, %s9, %s7
  $region1: #{tpu_custom_call.1} parent=0
    #allocation5 [shape = 'u8[1024]{0}', space=vmem, size = 0x400, scoped, tag = 'output window, operand 0, single buffered']
    #allocation6 [shape = 's32[1]{0}', space=sflag, size = 0x4, scoped, tag = 'scoped memory for tpu_custom_call.1']
    %11 = vsyncpa [#allocation6], 0
    // Predicated region
    $region2: #{tpu_custom_call.1} parent=1 // pred_check
      _
    $region3: #{tpu_custom_call.1} parent=1 // pred_check_branch
      %13 = sbr.rel (0) target = $region5
    $region4: #{tpu_custom_call.1} parent=1 // pred_region
      _
    $region5: #{tpu_custom_call.1} parent=1 // pred_fallthru
      _
    // Predicated region
    $region6: #{tpu_custom_call.1} parent=1 // pred_check
      _
    $region7: #{tpu_custom_call.1} parent=1 // pred_check_branch
      %15 = sbr.rel (0) target = $region9
    $region8: #{tpu_custom_call.1} parent=1 // pred_region
      _
    $region9: #{tpu_custom_call.1} parent=1 // pred_fallthru
      _
    // Predicated region
    $region10: #{tpu_custom_call.1} parent=1 // pred_check
      _
    $region11: #{tpu_custom_call.1} parent=1 // pred_check_branch
      %17 = sbr.rel (0) target = $region13
    $region12: #{tpu_custom_call.1} parent=1 // pred_region
      _
    $region13: #{tpu_custom_call.1} parent=1 // pred_fallthru
      _
    // Predicated region
    $region14: #{tpu_custom_call.1} parent=1 // pred_check
      _
    $region15: #{tpu_custom_call.1} parent=1 // pred_check_branch
      %19 = sbr.rel (0) target = $region17
    $region16: #{tpu_custom_call.1} parent=1 // pred_region
      _
    $region17: #{tpu_custom_call.1} parent=1 // pred_fallthru
      _
    // Predicated region
    $region18: #{tpu_custom_call.1} parent=1 // pred_check
      _
    $region19: #{tpu_custom_call.1} parent=1 // pred_check_branch
      %21 = sbr.rel (0) target = $region21
    $region20: #{tpu_custom_call.1} parent=1 // pred_region
      _
    $region21: #{tpu_custom_call.1} parent=1 // pred_fallthru
      _
    // Predicated region
    $region22: #{tpu_custom_call.1} parent=1 // pred_check
      _
    $region23: #{tpu_custom_call.1} parent=1 // pred_check_branch
      %23 = sbr.rel (0) target = $region25
    $region24: #{tpu_custom_call.1} parent=1 // pred_region
      _
    $region25: #{tpu_custom_call.1} parent=1 // pred_fallthru
      _
    %p24 = scmp.eq.s32.totalorder 0, 0
    // Predicated region
    $region26: #{tpu_custom_call.1} parent=1 // pred_check
      %p25 = pneg %p24
    $region27: #{tpu_custom_call.1} parent=1 // pred_check_branch
      %27 = sbr.rel (%p25) target = $region29
    $region28: #{tpu_custom_call.1} parent=1 // pred_region
      %vm28 = vcmask 1024
      %29 = vst.msk [vmem:[#allocation2] sm:$0x3] %vm28, -1e+30
      %30 = vst.msk [vmem:[#allocation3] sm:$0x3] %vm28, 0.0
      %vm31 = vcmask 254976
      %32 = vst.msk [vmem:[#allocation4] sm:$0x3] %vm31, 0.0
    $region29: #{tpu_custom_call.1} parent=1 // pred_fallthru
      _
    %v33 = vld [vmem:[%s0] sm:$0xff]
    %v34 = vld [vmem:[%s0 + $0x8] sm:$0xff]
    %v35 = vld [vmem:[%s1] sm:$0x1]
    %v37 = vlaneseq
    %v38 = vshrl.u32 %v37, 7
    %v39 = vsub.s32 0, %v38
    %v40 = vrot.slane %v35, %v39
    %v42 = vmul.f32 %v33, %v40
    %v43 = vmul.f32 %v34, %v40
    %vm44 = vcmask 261120
    %v45 = vsel %vm44, %v42, 0.0
    %46 = vadd.xlane.f32.xlu0 %v45
    %v47 = vpop.xlane.xlu0 %46
    %v48 = vsel %vm44, %v43, 0.0
    %49 = vadd.xlane.f32.xlu0 %v48
    %v50 = vpop.xlane.xlu0 %49
    %v51 = vld [vmem:[#allocation2] sm:$0x3]
    %v54 = vlaneseq
    %v55 = vand.u32 %v54, 127
    %v56 = vlaneseq
    %v57 = vshrl.u32 %v56, 7
    %v58 = vsub.s32 %v55, %v57
    %v59 = vrot.slane %v47, %v58
    %v60 = vlaneseq
    %v61 = vshrl.u32 %v60, 7
    %v62 = vsub.s32 %v55, %v61
    %v63 = vrot.slane %v50, %v62
    %vm64 = vcmask 1041409
    %v65 = vsel %vm64, %v63, %v59
    %vm67 = vcmask 58368
    %v68 = vsel %vm67, %v65, -inf
    %69 = vmax.xlane.f32.xlu0 %v68
    %v70 = vpop.xlane.xlu0 %69
    %v71 = vmax.f32 %v51, %v70
    %v72 = vsub.f32 %v51, %v71
    %v73 = vmul.f32 %v72, 1.442695
    %v74 = vpow.pop %v73
    %76 = vset.pattern.permute.xlu0 0
    %77 = vperm.xlu0 %76, %v71
    %v78 = vpop.permute.xlu0 %77
    %v79 = vlaneseq
    %v80 = vshrl.u32 %v79, 7
    %v81 = vsub.s32 0, %v80
    %v82 = vrot.slane %v78, %v81
    %v83 = vlaneseq
    %v84 = vshrl.u32 %v83, 7
    %v85 = vsub.s32 1, %v84
    %v86 = vrot.slane %v78, %v85
    %v89 = vsub.f32 %v47, %v82
    %v90 = vsub.f32 %v50, %v86
    %v91 = vmul.f32 %v89, 1.442695
    %v92 = vpow.pop %v91
    %v93 = vmul.f32 %v90, 1.442695
    %v94 = vpow.pop %v93
    %v95 = vld [vmem:[#allocation3] sm:$0x3]
    %v96 = vmul.f32 %v74, %v95
    %99 = vset.pattern.permute.xlu0 0
    %100 = vperm.xlu0 %99, %v92
    %v101 = vpop.permute.xlu0 %100
    %102 = vset.pattern.permute.xlu0 0
    %103 = vperm.xlu0 %102, %v94
    %v104 = vpop.permute.xlu0 %103
    %v105 = vlaneseq
    %v106 = vshrl.u32 %v105, 7
    %v107 = vsub.s32 %v55, %v106
    %v108 = vrot.slane %v101, %v107
    %v109 = vlaneseq
    %v110 = vshrl.u32 %v109, 7
    %v111 = vsub.s32 %v55, %v110
    %v112 = vrot.slane %v104, %v111
    %v113 = vsel %vm64, %v112, %v108
    %v115 = vsel %vm67, %v113, 0.0
    %116 = vadd.xlane.f32.xlu0 %v115
    %v117 = vpop.xlane.xlu0 %116
    %v118 = vadd.f32 %v96, %v117
    %vm119 = vcmask 1024
    %120 = vst.msk [vmem:[#allocation3] sm:$0x3] %vm119, %v118
    %v121 = vld [vmem:[#allocation4] sm:$0x3]
    %123 = vset.pattern.permute.xlu0 0
    %124 = vperm.xlu0 %123, %v74
    %v125 = vpop.permute.xlu0 %124
    %v127 = vmul.f32 %v125, %v121
    %v130 = vmul.f32 %v101, %v33
    %v131 = vmul.f32 %v104, %v34
    %v132 = vsel %vm44, %v130, 0.0
    %v133 = vrot.slane %v132, 4
    %v134 = vadd.f32 %v132, %v133
    %v135 = vrot.slane %v134, 2
    %v136 = vadd.f32 %v134, %v135
    %v137 = vrot.slane %v136, 1
    %v138 = vadd.f32 %v136, %v137
    %v139 = vsel %vm44, %v131, 0.0
    %v140 = vrot.slane %v139, 4
    %v141 = vadd.f32 %v139, %v140
    %v142 = vrot.slane %v141, 2
    %v143 = vadd.f32 %v141, %v142
    %v144 = vrot.slane %v143, 1
    %v145 = vadd.f32 %v143, %v144
    %v148 = vsel %vm64, %v145, %v138
    %v150 = vadd.f32 %v127, %v148
    %vm151 = vcmask 254976
    %152 = vst.msk [vmem:[#allocation4] sm:$0x3] %vm151, %v150
    %153 = vst.msk [vmem:[#allocation2] sm:$0x3] %vm119, %v71
    // Predicated region
    $region30: #{tpu_custom_call.1} parent=1 // pred_check
      %p154 = pneg %p24
    $region31: #{tpu_custom_call.1} parent=1 // pred_check_branch
      %156 = sbr.rel (%p154) target = $region33
    $region32: #{tpu_custom_call.1} parent=1 // pred_region
      %v157 = vld [vmem:[#allocation4] sm:$0x3]
      %v158 = vld [vmem:[#allocation3] sm:$0x3]
      %160 = vset.pattern.permute.xlu0 0
      %161 = vperm.xlu0 %160, %v158
      %v162 = vpop.permute.xlu0 %161
      %v164 = vrcp.pop %v162
      %v165 = vmul.f32 %v157, %v164
      %v166 = vld [vmem:[%s2] sm:$0xff]
      %v167 = vld [vmem:[%s2 + $0x8] sm:$0xff]
      %v168 = vld [vmem:[%s2 + $0x10] sm:$0xff]
      %v169 = vld [vmem:[%s2 + $0x18] sm:$0xff]
      %v170 = vld [vmem:[%s3] sm:$0x1]
      %v172 = vlaneseq
      %v173 = vshrl.u32 %v172, 7
      %v174 = vsub.s32 0, %v173
      %v175 = vrot.slane %v170, %v174
      %v178 = vsel %vm44, %v165, 0
      %180 = vmatprep.subr.mxu0 0.0
      %181 = vmatpush1.msra.mxu0 0.0
      %182 = vmatprep.subr.mxu0 0.0
      %183 = vmatpush1.msra.mxu0 0.0
      %184 = vmatprep.subr.mxu0 0.0
      %185 = vmatpush1.msra.mxu0 0.0
      %186 = vmatprep.subr.mxu0 0.0
      %187 = vmatpush1.msra.mxu0 0.0
      %188 = vmatprep.subr.mxu0 0.0
      %189 = vmatpush1.msra.mxu0 0.0
      %190 = vmatprep.subr.mxu0 0.0
      %191 = vmatpush1.msra.mxu0 0.0
      %192 = vmatprep.subr.mxu0 0.0
      %193 = vmatpush1.msra.mxu0 0.0
      %194 = vmatprep.subr.mxu0 0.0
      %195 = vmatpush1.msra.mxu0 0.0
      %196 = vmatprep.subr.mxu0 0.0
      %197 = vmatpush1.msra.mxu0 0.0
      %198 = vmatprep.subr.mxu0 0.0
      %199 = vmatpush1.msra.mxu0 0.0
      %200 = vmatprep.subr.mxu0 0.0
      %201 = vmatpush1.msra.mxu0 0.0
      %202 = vmatprep.subr.mxu0 0.0
      %203 = vmatpush1.msra.mxu0 0.0
      %204 = vmatprep.subr.mxu0 0.0
      %205 = vmatpush1.msra.mxu0 %v169
      %206 = vmatprep.subr.mxu0 0.0
      %207 = vmatpush1.msra.mxu0 %v168
      %208 = vmatprep.subr.mxu0 0.0
      %209 = vmatpush1.msra.mxu0 %v167
      %210 = vmatprep.subr.mxu0 0.0
      %211 = vmatpush1.msra.mxu0 %v166
      %212 = vmatprep.subr.mxu0 0.0
      %213 = vmatpush2.msra.mxu0 0.0
      %214 = vmatprep.subr.mxu0 0.0
      %215 = vmatpush2.msra.mxu0 0.0
      %216 = vmatprep.subr.mxu0 0.0
      %217 = vmatpush2.msra.mxu0 0.0
      %218 = vmatprep.subr.mxu0 0.0
      %219 = vmatpush2.msra.mxu0 0.0
      %220 = vmatprep.subr.mxu0 0.0
      %221 = vmatpush2.msra.mxu0 0.0
      %222 = vmatprep.subr.mxu0 0.0
      %223 = vmatpush2.msra.mxu0 0.0
      %224 = vmatprep.subr.mxu0 0.0
      %225 = vmatpush2.msra.mxu0 0.0
      %226 = vmatprep.subr.mxu0 0.0
      %227 = vmatpush2.msra.mxu0 0.0
      %228 = vmatprep.subr.mxu0 0.0
      %229 = vmatpush2.msra.mxu0 0.0
      %230 = vmatprep.subr.mxu0 0.0
      %231 = vmatpush2.msra.mxu0 0.0
      %232 = vmatprep.subr.mxu0 0.0
      %233 = vmatpush2.msra.mxu0 0.0
      %234 = vmatprep.subr.mxu0 0.0
      %235 = vmatpush2.msra.mxu0 0.0
      %236 = vmatprep.subr.mxu0 0.0
      %237 = vmatpush2.msra.mxu0 0.0
      %238 = vmatprep.subr.mxu0 0.0
      %239 = vmatpush2.msra.mxu0 0.0
      %240 = vmatprep.subr.mxu0 0.0
      %241 = vmatpush2.msra.mxu0 0.0
      %242 = vmatprep.subr.mxu0 0.0
      %243 = vmatpush2.msra.mxu0 0.0
      %244 = vmatprep.mubr.f32.mxu0 0.0
      %245 = vmatmul.mubr.f32.gmra.mxu0 %v178
      %v246 = vpop.f32.mrf.mxu0
      %v247 = vadd.f32 %v175, %v246
      %v248 = vpop.f32.mrf.mxu0
      %249 = vdwg.mxu0
      %v250 = vmul.f32 %v247, 0.5
      %v251 = vmul.f32 %v247, 0.70710677
      %vm252 = vcmp.ge.f32.partialorder %v251, 0.0
      %v253 = vsel %vm252, 1.0, -1.0
      %v254 = vand.u32 2147483647, %v251
      %v255 = vmul.f32 %v254, 0.3275911
      %v256 = vadd.f32 %v255, 1.0
      %v257 = vrcp.pop %v256
      %v258 = vmul.f32 1.0, %v257
      %v259 = vmul.f32 %v258, 1.0614054
      %v260 = vadd.f32 %v259, -1.4531521
      %v261 = vmul.f32 %v260, %v258
      %v262 = vadd.f32 %v261, 1.4214138
      %v263 = vmul.f32 %v262, %v258
      %v264 = vadd.f32 %v263, -0.28449672
      %v265 = vmul.f32 %v264, %v258
      %v266 = vadd.f32 %v265, 0.2548296
      %v267 = vmul.f32 %v266, %v258
      %v268 = vsub.f32 0.0, %v254
      %v269 = vmul.f32 %v268, %v254
      %v270 = vmul.f32 %v269, 1.442695
      %v271 = vpow.pop %v270
      %v272 = vmul.f32 %v267, %v271
      %v273 = vsub.f32 1.0, %v272
      %v274 = vmul.f32 %v253, %v273
      %v275 = vadd.f32 %v274, 1.0
      %v276 = vmul.f32 %v250, %v275
      %v277 = vld [vmem:[%s4] sm:$0xff]
      %v278 = vld [vmem:[%s4 + $0x8] sm:$0xff]
      %v279 = vld [vmem:[%s4 + $0x10] sm:$0xff]
      %v280 = vld [vmem:[%s4 + $0x18] sm:$0xff]
      %v281 = vld [vmem:[%s4 + $0x20] sm:$0xff]
      %v282 = vld [vmem:[%s4 + $0x28] sm:$0xff]
      %v283 = vld [vmem:[%s4 + $0x30] sm:$0xff]
      %v284 = vld [vmem:[%s4 + $0x38] sm:$0xff]
      %v285 = vld [vmem:[%s4 + $0x40] sm:$0xff]
      %v286 = vld [vmem:[%s4 + $0x48] sm:$0xff]
      %v287 = vld [vmem:[%s4 + $0x50] sm:$0xff]
      %v288 = vld [vmem:[%s4 + $0x58] sm:$0xff]
      %v289 = vld [vmem:[%s4 + $0x60] sm:$0xff]
      %v290 = vld [vmem:[%s4 + $0x68] sm:$0xff]
      %v291 = vld [vmem:[%s4 + $0x70] sm:$0xff]
      %v292 = vld [vmem:[%s4 + $0x78] sm:$0xff]
      %v293 = vld [vmem:[%s5] sm:$0x1]
      %v295 = vlaneseq
      %v296 = vshrl.u32 %v295, 7
      %v297 = vsub.s32 0, %v296
      %v298 = vrot.slane %v293, %v297
      %300 = vmatprep.subr.mxu0 0.0
      %301 = vmatpush1.msra.mxu0 %v292
      %302 = vmatprep.subr.mxu0 0.0
      %303 = vmatpush1.msra.mxu0 %v291
      %304 = vmatprep.subr.mxu0 0.0
      %305 = vmatpush1.msra.mxu0 %v290
      %306 = vmatprep.subr.mxu0 0.0
      %307 = vmatpush1.msra.mxu0 %v289
      %308 = vmatprep.subr.mxu0 0.0
      %309 = vmatpush1.msra.mxu0 %v288
      %310 = vmatprep.subr.mxu0 0.0
      %311 = vmatpush1.msra.mxu0 %v287
      %312 = vmatprep.subr.mxu0 0.0
      %313 = vmatpush1.msra.mxu0 %v286
      %314 = vmatprep.subr.mxu0 0.0
      %315 = vmatpush1.msra.mxu0 %v285
      %316 = vmatprep.subr.mxu0 0.0
      %317 = vmatpush1.msra.mxu0 %v284
      %318 = vmatprep.subr.mxu0 0.0
      %319 = vmatpush1.msra.mxu0 %v283
      %320 = vmatprep.subr.mxu0 0.0
      %321 = vmatpush1.msra.mxu0 %v282
      %322 = vmatprep.subr.mxu0 0.0
      %323 = vmatpush1.msra.mxu0 %v281
      %324 = vmatprep.subr.mxu0 0.0
      %325 = vmatpush1.msra.mxu0 %v280
      %326 = vmatprep.subr.mxu0 0.0
      %327 = vmatpush1.msra.mxu0 %v279
      %328 = vmatprep.subr.mxu0 0.0
      %329 = vmatpush1.msra.mxu0 %v278
      %330 = vmatprep.subr.mxu0 0.0
      %331 = vmatpush1.msra.mxu0 %v277
      %332 = vmatprep.subr.mxu0 0.0
      %333 = vmatpush2.msra.mxu0 0.0
      %334 = vmatprep.subr.mxu0 0.0
      %335 = vmatpush2.msra.mxu0 0.0
      %336 = vmatprep.subr.mxu0 0.0
      %337 = vmatpush2.msra.mxu0 0.0
      %338 = vmatprep.subr.mxu0 0.0
      %339 = vmatpush2.msra.mxu0 0.0
      %340 = vmatprep.subr.mxu0 0.0
      %341 = vmatpush2.msra.mxu0 0.0
      %342 = vmatprep.subr.mxu0 0.0
      %343 = vmatpush2.msra.mxu0 0.0
      %344 = vmatprep.subr.mxu0 0.0
      %345 = vmatpush2.msra.mxu0 0.0
      %346 = vmatprep.subr.mxu0 0.0
      %347 = vmatpush2.msra.mxu0 0.0
      %348 = vmatprep.subr.mxu0 0.0
      %349 = vmatpush2.msra.mxu0 0.0
      %350 = vmatprep.subr.mxu0 0.0
      %351 = vmatpush2.msra.mxu0 0.0
      %352 = vmatprep.subr.mxu0 0.0
      %353 = vmatpush2.msra.mxu0 0.0
      %354 = vmatprep.subr.mxu0 0.0
      %355 = vmatpush2.msra.mxu0 0.0
      %356 = vmatprep.subr.mxu0 0.0
      %357 = vmatpush2.msra.mxu0 0.0
      %358 = vmatprep.subr.mxu0 0.0
      %359 = vmatpush2.msra.mxu0 0.0
      %360 = vmatprep.subr.mxu0 0.0
      %361 = vmatpush2.msra.mxu0 0.0
      %362 = vmatprep.subr.mxu0 0.0
      %363 = vmatpush2.msra.mxu0 0.0
      %364 = vmatprep.mubr.f32.mxu0 0.0
      %365 = vmatmul.mubr.f32.gmra.mxu0 %v276
      %v366 = vpop.f32.mrf.mxu0
      %v367 = vadd.f32 %v298, %v366
      %v368 = vpop.f32.mrf.mxu0
      %369 = vdwg.mxu0
      %v370 = vmul.f32 %v367, 0.5
      %v371 = vtanh.pop %v370
      %v372 = vadd.f32 %v371, 1.0
      %v373 = vmul.f32 %v372, 0.5
      %vm374 = vcmask 66560
      %375 = vst.msk [vmem:[#allocation5] sm:$0x3] %vm374, %v373
    $region33: #{tpu_custom_call.1} parent=1 // pred_fallthru
      _
    // Predicated region
    $region34: #{tpu_custom_call.1} parent=1 // pred_check
      _
    $region35: #{tpu_custom_call.1} parent=1 // pred_check_branch
      %377 = sbr.rel (0) target = $region37
    $region36: #{tpu_custom_call.1} parent=1 // pred_region
      %s379 = ssub.s32 32, 32
      %380 = vsyncadd [#allocation6], %s379
      %s382 = sshll.u32 [#allocation5], 4
      %s383 = int_to_ptr.vmem [resolvable:$true] %s382
      %385 = dma.vmem_to_hbm [thread:$0]  %s383, 32, %s6, [#allocation6]
    $region37: #{tpu_custom_call.1} parent=1 // pred_fallthru
      _
    // Predicated region
    $region38: #{tpu_custom_call.1} parent=1 // pred_check
      _
    $region39: #{tpu_custom_call.1} parent=1 // pred_check_branch
      %387 = sbr.rel (0) target = $region41
    $region40: #{tpu_custom_call.1} parent=1 // pred_region
      %388 = dma.done [#allocation6], 32
    $region41: #{tpu_custom_call.1} parent=1 // pred_fallthru
      _
    %389 = vsyncpa [#allocation6], 1

</llo_original>
